<compile_context>
chip_gen: v5e
topology: v5e:2x2
jax: 0.10.0
libtpu: 0.0.40
codegen_flags: <defaults>
</compile_context>

<pallas_src>
import functools

import jax
import jax.numpy as jnp
from jax.experimental import pallas as pl
from jax.experimental.pallas import tpu as pltpu


# ----------------------------------------------------------------------------
# Kernel: one GCNConv layer, aggregate-first association:
#   out = act( (A @ X) @ W + b )
# Grid = (row_tiles, k_tiles); adjacency streamed in (tm, tk) bf16 tiles,
# A@X accumulated in a (tm, F) f32 VMEM scratch across the k axis.
# ----------------------------------------------------------------------------
def _gcn_conv_kernel(adj_ref, x_ref, w_ref, b_ref, out_ref, acc_ref, *,
                     apply_relu):
    k = pl.program_id(1)

    @pl.when(k == 0)
    def _():
        acc_ref[...] = jnp.zeros_like(acc_ref)

    # bf16 x bf16 -> f32 accumulation on the MXU.
    acc_ref[...] += jnp.dot(adj_ref[...], x_ref[...],
                            preferred_element_type=jnp.float32)

    @pl.when(k == pl.num_programs(1) - 1)
    def _():
        h = jnp.dot(acc_ref[...].astype(jnp.bfloat16), w_ref[...],
                    preferred_element_type=jnp.float32) + b_ref[...]
        if apply_relu:
            h = jnp.maximum(h, 0.0)
        out_ref[...] = h.astype(out_ref.dtype)


def _round_up(v, m):
    return ((v + m - 1) // m) * m


def _pad2d(a, rows, cols):
    r, c = a.shape
    return jnp.pad(a, ((0, rows - r), (0, cols - c)))


def _pick_tile(n_pad, candidates):
    for c in candidates:
        if n_pad % c == 0:
            return c
    return 128


def gcn_conv(adj_p, x_p, w_p, b_p, *, apply_relu, out_dtype):
    """One GCNConv layer on pre-padded, pre-cast operands."""
    n_pad = adj_p.shape[0]
    f_pad = x_p.shape[1]
    g_pad = w_p.shape[1]

    tm = _pick_tile(n_pad, (256, 128))              # rows (MXU-friendly)
    tk = _pick_tile(n_pad, (1024, 512, 256, 128))   # adjacency k stream
    grid = (n_pad // tm, n_pad // tk)

    # Resident VMEM budget: double-buffered streaming tiles + resident W/b +
    # output tile + f32 accumulator.  Raise the scoped limit accordingly
    # (v5e defaults to 16 MiB), cap below v7x's 64 MiB physical VMEM.
    need = (2 * tm * tk * 2            # adj tiles (bf16, double buffered)
            + 2 * tk * f_pad * 2       # x tiles (bf16, double buffered)
            + f_pad * g_pad * 2        # weight (resident)
            + g_pad * 4                # bias
            + 2 * tm * g_pad * 4       # output tile
            + tm * f_pad * 4)          # accumulator scratch
    vmem_limit = int(min(max(4 * need, 32 * 2**20), 64 * 2**20))

    out_bytes = 2 if out_dtype == jnp.bfloat16 else 4
    flops = 2 * n_pad * n_pad * f_pad + 2 * n_pad * f_pad * g_pad
    bytes_accessed = (2 * n_pad * n_pad + 2 * n_pad * f_pad
                      + 2 * f_pad * g_pad + 4 * g_pad
                      + out_bytes * n_pad * g_pad)

    return pl.pallas_call(
        functools.partial(_gcn_conv_kernel, apply_relu=apply_relu),
        out_shape=jax.ShapeDtypeStruct((n_pad, g_pad), out_dtype),
        grid_spec=pltpu.PrefetchScalarGridSpec(
            num_scalar_prefetch=0,
            grid=grid,
            in_specs=[
                pl.BlockSpec((tm, tk), lambda i, k: (i, k)),        # A tile
                pl.BlockSpec((tk, f_pad), lambda i, k: (k, 0)),     # X k-slab
                pl.BlockSpec((f_pad, g_pad), lambda i, k: (0, 0)),  # W resident
                pl.BlockSpec((1, g_pad), lambda i, k: (0, 0)),      # bias
            ],
            out_specs=pl.BlockSpec((tm, g_pad), lambda i, k: (i, 0)),
            scratch_shapes=[pltpu.VMEM((tm, f_pad), jnp.float32)],
        ),
        compiler_params=pltpu.CompilerParams(
            dimension_semantics=("parallel", "arbitrary"),
            vmem_limit_bytes=vmem_limit),
        cost_estimate=pl.CostEstimate(
            flops=int(flops), transcendentals=0,
            bytes_accessed=int(bytes_accessed)),
    )(adj_p, x_p, w_p, b_p)


# ----------------------------------------------------------------------------
# One-time setup: pad + cast static operands (adjacency, weights, biases).
# ----------------------------------------------------------------------------
def prepare_adj(adj):
    n = adj.shape[0]
    n_pad = _round_up(n, 128)
    # Pad region must be exactly zero (see invariant at top of file).
    return _pad2d(adj, n_pad, n_pad).astype(jnp.bfloat16)


def prepare_params(params):
    w1, b1, w2, b2 = params
    f_in, hidden = w1.shape
    out_dim = w2.shape[1]
    fp = _round_up(f_in, 128)
    hp = _round_up(hidden, 128)
    op = _round_up(out_dim, 128)
    return (_pad2d(w1, fp, hp).astype(jnp.bfloat16),
            _pad2d(b1, 1, hp).astype(jnp.float32),
            _pad2d(w2, hp, op).astype(jnp.bfloat16),
            _pad2d(b2, 1, op).astype(jnp.float32))


# ----------------------------------------------------------------------------
# Jitted forward: only the X pad/cast and the final slice remain per call and
# fuse with the surrounding XLA program.
# ----------------------------------------------------------------------------
@functools.partial(jax.jit, static_argnames=("out_dim",))
def gcn_forward(x, adj_p, padded_params, out_dim):
    w1_p, b1_p, w2_p, b2_p = padded_params
    n = x.shape[0]
    n_pad = adj_p.shape[0]
    f_pad = w1_p.shape[0]

    x_p = _pad2d(x, n_pad, f_pad).astype(jnp.bfloat16)

    # Layer 1: H = relu(A @ X @ W1 + b1), kept bf16 to feed layer 2's MXU.
    h = gcn_conv(adj_p, x_p, w1_p, b1_p,
                 apply_relu=True, out_dtype=jnp.bfloat16)
    # Layer 2: OUT = A @ H @ W2 + b2  (f32 output).
    out = gcn_conv(adj_p, h, w2_p, b2_p,
                   apply_relu=False, out_dtype=jnp.float32)
    return out[:n, :out_dim]


# ----------------------------------------------------------------------------
# Demo / correctness check.
# ----------------------------------------------------------------------------
def glorot(key, shape):
    fan_in, fan_out = shape
    limit = jnp.sqrt(6.0 / (fan_in + fan_out))
    return jax.random.uniform(key, shape, jnp.float32, -limit, limit)


def make_normalized_adj(key, n):
    """Random symmetric graph -> A_hat = D^{-1/2} (A + I) D^{-1/2}."""
    raw = jax.random.bernoulli(key, 0.2, (n, n)).astype(jnp.float32)
    a = jnp.maximum(raw, raw.T)
    a = a + jnp.eye(n, dtype=jnp.float32)
    deg = a.sum(axis=1)
    d_inv_sqrt = 1.0 / jnp.sqrt(deg)
    return a * d_inv_sqrt[:, None] * d_inv_sqrt[None, :]


if __name__ == "__main__":
    # N nodes = 32, num_features = 16, hidden_channels = 32, out_dim = 8.
    N, NUM_FEATURES, HIDDEN, OUT_DIM = 32, 16, 32, 8

    key = jax.random.PRNGKey(0)
    k_x, k_adj, k_w1, k_b1, k_w2, k_b2 = jax.random.split(key, 6)

    x = jax.random.normal(k_x, (N, NUM_FEATURES), jnp.float32)
    adj = make_normalized_adj(k_adj, N)

    w1 = glorot(k_w1, (NUM_FEATURES, HIDDEN))
    b1 = 0.1 * jax.random.normal(k_b1, (1, HIDDEN), jnp.float32)
    w2 = glorot(k_w2, (HIDDEN, OUT_DIM))
    b2 = 0.1 * jax.random.normal(k_b2, (1, OUT_DIM), jnp.float32)

    adj_p = prepare_adj(adj)              # static per graph
    pparams = prepare_params((w1, b1, w2, b2))   # static per model

    out = jax.block_until_ready(gcn_forward(x, adj_p, pparams, out_dim=OUT_DIM))
    assert out.shape == (N, OUT_DIM)

    # bf16-matched reference (same casts as the kernel, f32 accumulation).
    adj_b, x_b = adj.astype(jnp.bfloat16), x.astype(jnp.bfloat16)
    agg1 = jnp.dot(adj_b, x_b, preferred_element_type=jnp.float32)
    h_ref = jnp.maximum(
        jnp.dot(agg1.astype(jnp.bfloat16), w1.astype(jnp.bfloat16),
                preferred_element_type=jnp.float32) + b1, 0.0)
    agg2 = jnp.dot(adj_b, h_ref.astype(jnp.bfloat16),
                   preferred_element_type=jnp.float32)
    ref_bf = jnp.dot(agg2.astype(jnp.bfloat16), w2.astype(jnp.bfloat16),
                     preferred_element_type=jnp.float32) + b2
    assert jnp.allclose(out, ref_bf, atol=1e-2, rtol=1e-2), float(
        jnp.max(jnp.abs(out - ref_bf)))

    # Full-f32 reference (module semantics); loose tolerance for bf16 drift.
    ref_f32 = adj @ jnp.maximum(adj @ (x @ w1) + b1, 0.0) @ w2 + b2
    assert jnp.allclose(out, ref_f32, atol=5e-2, rtol=5e-2), float(
        jnp.max(jnp.abs(out - ref_f32)))

    print("KERNEL_OK")
</pallas_src>

<mosaic_0001>
module attributes {stable_mosaic.version = 11 : i64} {
  func.func @_gcn_conv_kernel(%arg0: i32, %arg1: i32, %arg2: memref<128x128xbf16, #tpu.memory_space<vmem>>, %arg3: memref<128x128xbf16, #tpu.memory_space<vmem>>, %arg4: memref<128x128xbf16, #tpu.memory_space<vmem>>, %arg5: memref<1x128xf32, #tpu.memory_space<vmem>>, %arg6: memref<128x128xbf16, #tpu.memory_space<vmem>>, %arg7: memref<128x128xf32, #tpu.memory_space<vmem>>) attributes {dimension_semantics = [#tpu.dimension_semantics<parallel>, #tpu.dimension_semantics<arbitrary>], iteration_bounds = array<i64: 1, 1>, scalar_prefetch = 0 : i64, scratch_operands = 1 : i64, tpu.core_type = #tpu.core_type<tc>, window_params = [{transform_indices = @transform_0, window_bounds = array<i64: 128, 128>}, {transform_indices = @transform_1, window_bounds = array<i64: 128, 128>}, {pipeline_mode = #tpu.pipeline_mode<synchronous>, transform_indices = @transform_2, window_bounds = array<i64: 128, 128>}, {pipeline_mode = #tpu.pipeline_mode<synchronous>, transform_indices = @transform_3, window_bounds = array<i64: 1, 128>}, {transform_indices = @transform_4, window_bounds = array<i64: 128, 128>}]} {
    %c0_i32 = arith.constant 0 : i32
    %0 = arith.cmpi eq, %arg1, %c0_i32 : i32
    %1 = arith.extui %0 : i1 to i32
    %c0_i32_0 = arith.constant 0 : i32
    %2 = arith.cmpi ne, %1, %c0_i32_0 : i32
    scf.if %2 {
      %cst_10 = arith.constant 0.000000e+00 : f32
      %12 = vector.broadcast %cst_10 : f32 to vector<128x128xf32>
      %c0_11 = arith.constant 0 : index
      %c0_12 = arith.constant 0 : index
      %13 = vector.load %arg7[%c0_11, %c0_12] : memref<128x128xf32, #tpu.memory_space<vmem>>, vector<128x128xf32>
      tpu.vector_store %arg7[%c0_11, %c0_12], %12 {strides = array<i32>} : memref<128x128xf32, #tpu.memory_space<vmem>>, vector<128x128xf32>,
    } else {
    }
    %c0 = arith.constant 0 : index
    %c0_1 = arith.constant 0 : index
    %3 = vector.load %arg7[%c0, %c0_1] : memref<128x128xf32, #tpu.memory_space<vmem>>, vector<128x128xf32>
    %c0_2 = arith.constant 0 : index
    %c0_3 = arith.constant 0 : index
    %4 = vector.load %arg2[%c0_2, %c0_3] : memref<128x128xbf16, #tpu.memory_space<vmem>>, vector<128x128xbf16>
    %c0_4 = arith.constant 0 : index
    %c0_5 = arith.constant 0 : index
    %5 = vector.load %arg3[%c0_4, %c0_5] : memref<128x128xbf16, #tpu.memory_space<vmem>>, vector<128x128xbf16>
    %cst = arith.constant dense<0.000000e+00> : vector<128x128xf32>
    %6 = tpu.matmul %4, %5, %cst {dimension_numbers = #tpu.dot_dimension_numbers<[1], [0], [0], [1], [0, 0, 1, 1], [], []>} : vector<128x128xbf16>, vector<128x128xbf16>, vector<128x128xf32> -> vector<128x128xf32>
    %7 = arith.addf %3, %6 : vector<128x128xf32>
    %c0_6 = arith.constant 0 : index
    %c0_7 = arith.constant 0 : index
    %8 = vector.load %arg7[%c0_6, %c0_7] : memref<128x128xf32, #tpu.memory_space<vmem>>, vector<128x128xf32>
    tpu.vector_store %arg7[%c0_6, %c0_7], %7 {strides = array<i32>} : memref<128x128xf32, #tpu.memory_space<vmem>>, vector<128x128xf32>,
    %c0_i32_8 = arith.constant 0 : i32
    %9 = arith.cmpi eq, %arg1, %c0_i32_8 : i32
    %10 = arith.extui %9 : i1 to i32
    %c0_i32_9 = arith.constant 0 : i32
    %11 = arith.cmpi ne, %10, %c0_i32_9 : i32
    scf.if %11 {
      %c0_10 = arith.constant 0 : index
      %c0_11 = arith.constant 0 : index
      %12 = vector.load %arg7[%c0_10, %c0_11] : memref<128x128xf32, #tpu.memory_space<vmem>>, vector<128x128xf32>
      %13 = arith.truncf %12 : vector<128x128xf32> to vector<128x128xbf16>
      %c0_12 = arith.constant 0 : index
      %c0_13 = arith.constant 0 : index
      %14 = vector.load %arg4[%c0_12, %c0_13] : memref<128x128xbf16, #tpu.memory_space<vmem>>, vector<128x128xbf16>
      %cst_14 = arith.constant dense<0.000000e+00> : vector<128x128xf32>
      %15 = tpu.matmul %13, %14, %cst_14 {dimension_numbers = #tpu.dot_dimension_numbers<[1], [0], [0], [1], [0, 0, 1, 1], [], []>} : vector<128x128xbf16>, vector<128x128xbf16>, vector<128x128xf32> -> vector<128x128xf32>
      %c0_15 = arith.constant 0 : index
      %c0_16 = arith.constant 0 : index
      %16 = vector.load %arg5[%c0_15, %c0_16] : memref<1x128xf32, #tpu.memory_space<vmem>>, vector<1x128xf32>
      %17 = vector.broadcast %16 : vector<1x128xf32> to vector<128x128xf32>
      %18 = arith.addf %15, %17 : vector<128x128xf32>
      %cst_17 = arith.constant 0.000000e+00 : f32
      %19 = vector.broadcast %cst_17 : f32 to vector<128x128xf32>
      %20 = arith.maximumf %18, %19 : vector<128x128xf32>
      %21 = arith.truncf %20 : vector<128x128xf32> to vector<128x128xbf16>
      %c0_18 = arith.constant 0 : index
      %c0_19 = arith.constant 0 : index
      %22 = vector.load %arg6[%c0_18, %c0_19] : memref<128x128xbf16, #tpu.memory_space<vmem>>, vector<128x128xbf16>
      tpu.vector_store %arg6[%c0_18, %c0_19], %21 {strides = array<i32>} : memref<128x128xbf16, #tpu.memory_space<vmem>>, vector<128x128xbf16>,
    } else {
    }
    return
  }
  func.func @transform_0(%arg0: i32, %arg1: i32) -> (i32, i32) {
    %c0_i32 = arith.constant 0 : i32
    return %arg0, %arg1 : i32, i32
  }
  func.func @transform_1(%arg0: i32, %arg1: i32) -> (i32, i32) {
    %c0_i32 = arith.constant 0 : i32
    %c0_i32_0 = arith.constant 0 : i32
    return %arg1, %c0_i32 : i32, i32
  }
  func.func @transform_2(%arg0: i32, %arg1: i32) -> (i32, i32) {
    %c0_i32 = arith.constant 0 : i32
    %c0_i32_0 = arith.constant 0 : i32
    %c0_i32_1 = arith.constant 0 : i32
    return %c0_i32, %c0_i32_0 : i32, i32
  }
  func.func @transform_3(%arg0: i32, %arg1: i32) -> (i32, i32) {
    %c0_i32 = arith.constant 0 : i32
    %c0_i32_0 = arith.constant 0 : i32
    %c0_i32_1 = arith.constant 0 : i32
    return %c0_i32, %c0_i32_0 : i32, i32
  }
  func.func @transform_4(%arg0: i32, %arg1: i32) -> (i32, i32) {
    %c0_i32 = arith.constant 0 : i32
    %c0_i32_0 = arith.constant 0 : i32
    return %arg0, %c0_i32 : i32, i32
  }
}

module attributes {stable_mosaic.version = 11 : i64} {
  func.func @_gcn_conv_kernel(%arg0: i32, %arg1: i32, %arg2: memref<128x128xbf16, #tpu.memory_space<vmem>>, %arg3: memref<128x128xbf16, #tpu.memory_space<vmem>>, %arg4: memref<128x128xbf16, #tpu.memory_space<vmem>>, %arg5: memref<1x128xf32, #tpu.memory_space<vmem>>, %arg6: memref<128x128xf32, #tpu.memory_space<vmem>>, %arg7: memref<128x128xf32, #tpu.memory_space<vmem>>) attributes {dimension_semantics = [#tpu.dimension_semantics<parallel>, #tpu.dimension_semantics<arbitrary>], iteration_bounds = array<i64: 1, 1>, scalar_prefetch = 0 : i64, scratch_operands = 1 : i64, tpu.core_type = #tpu.core_type<tc>, window_params = [{transform_indices = @transform_0, window_bounds = array<i64: 128, 128>}, {transform_indices = @transform_1, window_bounds = array<i64: 128, 128>}, {pipeline_mode = #tpu.pipeline_mode<synchronous>, transform_indices = @transform_2, window_bounds = array<i64: 128, 128>}, {pipeline_mode = #tpu.pipeline_mode<synchronous>, transform_indices = @transform_3, window_bounds = array<i64: 1, 128>}, {transform_indices = @transform_4, window_bounds = array<i64: 128, 128>}]} {
    %c0_i32 = arith.constant 0 : i32
    %0 = arith.cmpi eq, %arg1, %c0_i32 : i32
    %1 = arith.extui %0 : i1 to i32
    %c0_i32_0 = arith.constant 0 : i32
    %2 = arith.cmpi ne, %1, %c0_i32_0 : i32
    scf.if %2 {
      %cst_10 = arith.constant 0.000000e+00 : f32
      %12 = vector.broadcast %cst_10 : f32 to vector<128x128xf32>
      %c0_11 = arith.constant 0 : index
      %c0_12 = arith.constant 0 : index
      %13 = vector.load %arg7[%c0_11, %c0_12] : memref<128x128xf32, #tpu.memory_space<vmem>>, vector<128x128xf32>
      tpu.vector_store %arg7[%c0_11, %c0_12], %12 {strides = array<i32>} : memref<128x128xf32, #tpu.memory_space<vmem>>, vector<128x128xf32>,
    } else {
    }
    %c0 = arith.constant 0 : index
    %c0_1 = arith.constant 0 : index
    %3 = vector.load %arg7[%c0, %c0_1] : memref<128x128xf32, #tpu.memory_space<vmem>>, vector<128x128xf32>
    %c0_2 = arith.constant 0 : index
    %c0_3 = arith.constant 0 : index
    %4 = vector.load %arg2[%c0_2, %c0_3] : memref<128x128xbf16, #tpu.memory_space<vmem>>, vector<128x128xbf16>
    %c0_4 = arith.constant 0 : index
    %c0_5 = arith.constant 0 : index
    %5 = vector.load %arg3[%c0_4, %c0_5] : memref<128x128xbf16, #tpu.memory_space<vmem>>, vector<128x128xbf16>
    %cst = arith.constant dense<0.000000e+00> : vector<128x128xf32>
    %6 = tpu.matmul %4, %5, %cst {dimension_numbers = #tpu.dot_dimension_numbers<[1], [0], [0], [1], [0, 0, 1, 1], [], []>} : vector<128x128xbf16>, vector<128x128xbf16>, vector<128x128xf32> -> vector<128x128xf32>
    %7 = arith.addf %3, %6 : vector<128x128xf32>
    %c0_6 = arith.constant 0 : index
    %c0_7 = arith.constant 0 : index
    %8 = vector.load %arg7[%c0_6, %c0_7] : memref<128x128xf32, #tpu.memory_space<vmem>>, vector<128x128xf32>
    tpu.vector_store %arg7[%c0_6, %c0_7], %7 {strides = array<i32>} : memref<128x128xf32, #tpu.memory_space<vmem>>, vector<128x128xf32>,
    %c0_i32_8 = arith.constant 0 : i32
    %9 = arith.cmpi eq, %arg1, %c0_i32_8 : i32
    %10 = arith.extui %9 : i1 to i32
    %c0_i32_9 = arith.constant 0 : i32
    %11 = arith.cmpi ne, %10, %c0_i32_9 : i32
    scf.if %11 {
      %c0_10 = arith.constant 0 : index
      %c0_11 = arith.constant 0 : index
      %12 = vector.load %arg7[%c0_10, %c0_11] : memref<128x128xf32, #tpu.memory_space<vmem>>, vector<128x128xf32>
      %13 = arith.truncf %12 : vector<128x128xf32> to vector<128x128xbf16>
      %c0_12 = arith.constant 0 : index
      %c0_13 = arith.constant 0 : index
      %14 = vector.load %arg4[%c0_12, %c0_13] : memref<128x128xbf16, #tpu.memory_space<vmem>>, vector<128x128xbf16>
      %cst_14 = arith.constant dense<0.000000e+00> : vector<128x128xf32>
      %15 = tpu.matmul %13, %14, %cst_14 {dimension_numbers = #tpu.dot_dimension_numbers<[1], [0], [0], [1], [0, 0, 1, 1], [], []>} : vector<128x128xbf16>, vector<128x128xbf16>, vector<128x128xf32> -> vector<128x128xf32>
      %c0_15 = arith.constant 0 : index
      %c0_16 = arith.constant 0 : index
      %16 = vector.load %arg5[%c0_15, %c0_16] : memref<1x128xf32, #tpu.memory_space<vmem>>, vector<1x128xf32>
      %17 = vector.broadcast %16 : vector<1x128xf32> to vector<128x128xf32>
      %18 = arith.addf %15, %17 : vector<128x128xf32>
      %c0_17 = arith.constant 0 : index
      %c0_18 = arith.constant 0 : index
      %19 = vector.load %arg6[%c0_17, %c0_18] : memref<128x128xf32, #tpu.memory_space<vmem>>, vector<128x128xf32>
      tpu.vector_store %arg6[%c0_17, %c0_18], %18 {strides = array<i32>} : memref<128x128xf32, #tpu.memory_space<vmem>>, vector<128x128xf32>,
    } else {
    }
    return
  }
  func.func @transform_0(%arg0: i32, %arg1: i32) -> (i32, i32) {
    %c0_i32 = arith.constant 0 : i32
    return %arg0, %arg1 : i32, i32
  }
  func.func @transform_1(%arg0: i32, %arg1: i32) -> (i32, i32) {
    %c0_i32 = arith.constant 0 : i32
    %c0_i32_0 = arith.constant 0 : i32
    return %arg1, %c0_i32 : i32, i32
  }
  func.func @transform_2(%arg0: i32, %arg1: i32) -> (i32, i32) {
    %c0_i32 = arith.constant 0 : i32
    %c0_i32_0 = arith.constant 0 : i32
    %c0_i32_1 = arith.constant 0 : i32
    return %c0_i32, %c0_i32_0 : i32, i32
  }
  func.func @transform_3(%arg0: i32, %arg1: i32) -> (i32, i32) {
    %c0_i32 = arith.constant 0 : i32
    %c0_i32_0 = arith.constant 0 : i32
    %c0_i32_1 = arith.constant 0 : i32
    return %c0_i32, %c0_i32_0 : i32, i32
  }
  func.func @transform_4(%arg0: i32, %arg1: i32) -> (i32, i32) {
    %c0_i32 = arith.constant 0 : i32
    %c0_i32_0 = arith.constant 0 : i32
    return %arg0, %c0_i32 : i32, i32
  }
}

</mosaic_0001>

<llo_original>
// kernel: gcn_forward.3
$region0: #{gcn_forward.3}
  #allocation0 [shape = 'u32[]', space=smem, size = 0x4, offset = 0x4, fixed_abs, tag = 'smem constant byte address 0x4 - core index']
  #allocation1 [shape = 'u32[72,128]{1,0:T(1,128)}', space=vmem, size = 0x9000, scoped, tag = 'internal scratch']
  #allocation2 [shape = 'f32[128,128]{1,0:T(8,128)}', space=vmem, size = 0x10000, scoped, tag = 'scratch operand']
  %s0 = inlined_call_operand.vmem [shape: bf16[128,128], index: 0, kind: input, shape index: {}]
  %s1 = inlined_call_operand.vmem [shape: bf16[128,128], index: 1, kind: input, shape index: {}]
  %s2 = inlined_call_operand.vmem [shape: bf16[128,128], index: 2, kind: input, shape index: {}]
  %s3 = inlined_call_operand.vmem [shape: f32[1,128], index: 3, kind: input, shape index: {}]
  %s4 = inlined_call_operand.vmem [shape: f32[128,128], index: 4, kind: output, shape index: {}]
  %s5 = sld [smem:[#allocation0]]
  $region34: #{gcn_forward.3} parent=0
    _
  %s7 = ssub.s32 1, %s5
  %s8 = scalar_select 0, %s7, %s5
  // Predicated region
  $region2: #{gcn_forward.3} parent=0 // pred_check
    _
  $region3: #{gcn_forward.3} parent=0 // pred_check_branch
    %10 = sbr.rel (0) target = $region5
  $region4: #{gcn_forward.3} parent=0 // pred_region
    _
  $region5: #{gcn_forward.3} parent=0 // pred_fallthru
    _
  // Predicated region
  $region6: #{gcn_forward.3} parent=0 // pred_check
    _
  $region7: #{gcn_forward.3} parent=0 // pred_check_branch
    %12 = sbr.rel (0) target = $region9
  $region8: #{gcn_forward.3} parent=0 // pred_region
    _
  $region9: #{gcn_forward.3} parent=0 // pred_fallthru
    _
  // Predicated region
  $region10: #{gcn_forward.3} parent=0 // pred_check
    _
  $region11: #{gcn_forward.3} parent=0 // pred_check_branch
    %14 = sbr.rel (0) target = $region13
  $region12: #{gcn_forward.3} parent=0 // pred_region
    _
  $region13: #{gcn_forward.3} parent=0 // pred_fallthru
    _
  // Predicated region
  $region14: #{gcn_forward.3} parent=0 // pred_check
    _
  $region15: #{gcn_forward.3} parent=0 // pred_check_branch
    %16 = sbr.rel (0) target = $region17
  $region16: #{gcn_forward.3} parent=0 // pred_region
    _
  $region17: #{gcn_forward.3} parent=0 // pred_fallthru
    _
  %p17 = scmp.eq.s32.totalorder 0, 0
  // Predicated region
  $region18: #{gcn_forward.3} parent=0 // pred_check
    %p18 = pneg %p17
  $region19: #{gcn_forward.3} parent=0 // pred_check_branch
    %20 = sbr.rel (%p18) target = $region21
  $region20: #{gcn_forward.3} parent=0 // pred_region
    %21 = vst [vmem:[#allocation2] sm:$0xff] 0.0
    %22 = vst [vmem:[#allocation2 + $0x8] sm:$0xff] 0.0
    %23 = vst [vmem:[#allocation2 + $0x10] sm:$0xff] 0.0
    %24 = vst [vmem:[#allocation2 + $0x18] sm:$0xff] 0.0
    %25 = vst [vmem:[#allocation2 + $0x20] sm:$0xff] 0.0
    %26 = vst [vmem:[#allocation2 + $0x28] sm:$0xff] 0.0
    %27 = vst [vmem:[#allocation2 + $0x30] sm:$0xff] 0.0
    %28 = vst [vmem:[#allocation2 + $0x38] sm:$0xff] 0.0
    %29 = vst [vmem:[#allocation2 + $0x40] sm:$0xff] 0.0
    %30 = vst [vmem:[#allocation2 + $0x48] sm:$0xff] 0.0
    %31 = vst [vmem:[#allocation2 + $0x50] sm:$0xff] 0.0
    %32 = vst [vmem:[#allocation2 + $0x58] sm:$0xff] 0.0
    %33 = vst [vmem:[#allocation2 + $0x60] sm:$0xff] 0.0
    %34 = vst [vmem:[#allocation2 + $0x68] sm:$0xff] 0.0
    %35 = vst [vmem:[#allocation2 + $0x70] sm:$0xff] 0.0
    %36 = vst [vmem:[#allocation2 + $0x78] sm:$0xff] 0.0
  $region21: #{gcn_forward.3} parent=0 // pred_fallthru
    _
  %v37 = vld [vmem:[#allocation2] sm:$0xff]
  %v38 = vld [vmem:[#allocation2 + $0x8] sm:$0xff]
  %v39 = vld [vmem:[#allocation2 + $0x10] sm:$0xff]
  %v40 = vld [vmem:[#allocation2 + $0x18] sm:$0xff]
  %v41 = vld [vmem:[#allocation2 + $0x20] sm:$0xff]
  %v42 = vld [vmem:[#allocation2 + $0x28] sm:$0xff]
  %v43 = vld [vmem:[#allocation2 + $0x30] sm:$0xff]
  %v44 = vld [vmem:[#allocation2 + $0x38] sm:$0xff]
  %v45 = vld [vmem:[#allocation2 + $0x40] sm:$0xff]
  %v46 = vld [vmem:[#allocation2 + $0x48] sm:$0xff]
  %v47 = vld [vmem:[#allocation2 + $0x50] sm:$0xff]
  %v48 = vld [vmem:[#allocation2 + $0x58] sm:$0xff]
  %v49 = vld [vmem:[#allocation2 + $0x60] sm:$0xff]
  %v50 = vld [vmem:[#allocation2 + $0x68] sm:$0xff]
  %v51 = vld [vmem:[#allocation2 + $0x70] sm:$0xff]
  %v52 = vld [vmem:[#allocation2 + $0x78] sm:$0xff]
  %v53 = vld [vmem:[%s0] sm:$0xf]
  %v54 = vld [vmem:[%s0 + $0x4] sm:$0xf]
  %v55 = vld [vmem:[%s0 + $0x8] sm:$0xf]
  %v56 = vld [vmem:[%s0 + $0xc] sm:$0xf]
  %v57 = vld [vmem:[%s0 + $0x10] sm:$0xf]
  %v58 = vld [vmem:[%s0 + $0x14] sm:$0xf]
  %v59 = vld [vmem:[%s0 + $0x18] sm:$0xf]
  %v60 = vld [vmem:[%s0 + $0x1c] sm:$0xf]
  %v61 = vld [vmem:[%s0 + $0x20] sm:$0xf]
  %v62 = vld [vmem:[%s0 + $0x24] sm:$0xf]
  %v63 = vld [vmem:[%s0 + $0x28] sm:$0xf]
  %v64 = vld [vmem:[%s0 + $0x2c] sm:$0xf]
  %v65 = vld [vmem:[%s0 + $0x30] sm:$0xf]
  %v66 = vld [vmem:[%s0 + $0x34] sm:$0xf]
  %v67 = vld [vmem:[%s0 + $0x38] sm:$0xf]
  %v68 = vld [vmem:[%s0 + $0x3c] sm:$0xf]
  %v69 = vld [vmem:[%s1] sm:$0xf]
  %v70 = vld [vmem:[%s1 + $0x4] sm:$0xf]
  %v71 = vld [vmem:[%s1 + $0x8] sm:$0xf]
  %v72 = vld [vmem:[%s1 + $0xc] sm:$0xf]
  %v73 = vld [vmem:[%s1 + $0x10] sm:$0xf]
  %v74 = vld [vmem:[%s1 + $0x14] sm:$0xf]
  %v75 = vld [vmem:[%s1 + $0x18] sm:$0xf]
  %v76 = vld [vmem:[%s1 + $0x1c] sm:$0xf]
  %v77 = vld [vmem:[%s1 + $0x20] sm:$0xf]
  %v78 = vld [vmem:[%s1 + $0x24] sm:$0xf]
  %v79 = vld [vmem:[%s1 + $0x28] sm:$0xf]
  %v80 = vld [vmem:[%s1 + $0x2c] sm:$0xf]
  %v81 = vld [vmem:[%s1 + $0x30] sm:$0xf]
  %v82 = vld [vmem:[%s1 + $0x34] sm:$0xf]
  %v83 = vld [vmem:[%s1 + $0x38] sm:$0xf]
  %v84 = vld [vmem:[%s1 + $0x3c] sm:$0xf]
  %v101 = vunpack.c.l.b16 %v53
  %v102 = vunpack.c.l.b16 %v54
  %v103 = vunpack.c.l.b16 %v55
  %v104 = vunpack.c.l.b16 %v56
  %v105 = vunpack.c.l.b16 %v57
  %v106 = vunpack.c.l.b16 %v58
  %v107 = vunpack.c.l.b16 %v59
  %v108 = vunpack.c.l.b16 %v60
  %v109 = vunpack.c.l.b16 %v61
  %v110 = vunpack.c.l.b16 %v62
  %v111 = vunpack.c.l.b16 %v63
  %v112 = vunpack.c.l.b16 %v64
  %v113 = vunpack.c.l.b16 %v65
  %v114 = vunpack.c.l.b16 %v66
  %v115 = vunpack.c.l.b16 %v67
  %v116 = vunpack.c.l.b16 %v68
  %v117 = vpack.c.b16 %v102, %v101
  %v118 = vpack.c.b16 %v104, %v103
  %v119 = vpack.c.b16 %v106, %v105
  %v120 = vpack.c.b16 %v108, %v107
  %v121 = vpack.c.b16 %v110, %v109
  %v122 = vpack.c.b16 %v112, %v111
  %v123 = vpack.c.b16 %v114, %v113
  %v124 = vpack.c.b16 %v116, %v115
  %v149 = vunpack.c.l.b16 %v69
  %v150 = vunpack.c.l.b16 %v70
  %v151 = vunpack.c.l.b16 %v71
  %v152 = vunpack.c.l.b16 %v72
  %v153 = vunpack.c.l.b16 %v73
  %v154 = vunpack.c.l.b16 %v74
  %v155 = vunpack.c.l.b16 %v75
  %v156 = vunpack.c.l.b16 %v76
  %v157 = vunpack.c.l.b16 %v77
  %v158 = vunpack.c.l.b16 %v78
  %v159 = vunpack.c.l.b16 %v79
  %v160 = vunpack.c.l.b16 %v80
  %v161 = vunpack.c.l.b16 %v81
  %v162 = vunpack.c.l.b16 %v82
  %v163 = vunpack.c.l.b16 %v83
  %v164 = vunpack.c.l.b16 %v84
  %v165 = vpack.c.b16 %v150, %v149
  %v166 = vpack.c.b16 %v152, %v151
  %v167 = vpack.c.b16 %v154, %v153
  %v168 = vpack.c.b16 %v156, %v155
  %v169 = vpack.c.b16 %v158, %v157
  %v170 = vpack.c.b16 %v160, %v159
  %v171 = vpack.c.b16 %v162, %v161
  %v172 = vpack.c.b16 %v164, %v163
  %181 = vmatpush.bf16.msra.mxu0 %v172
  %182 = vmatpush.bf16.msra.mxu0 %v171
  %183 = vmatpush.bf16.msra.mxu0 %v170
  %184 = vmatpush.bf16.msra.mxu0 %v169
  %185 = vmatpush.bf16.msra.mxu0 %v168
  %186 = vmatpush.bf16.msra.mxu0 %v167
  %187 = vmatpush.bf16.msra.mxu0 %v166
  %188 = vmatpush.bf16.msra.mxu0 %v165
  %189 = vmatmul.bf16.gmra.mxu0 %v117
  %v190 = vpop.f32.mrf.mxu0
  %v191 = vadd.f32 0.0, %v190
  %v192 = vpop.f32.mrf.mxu0
  %v193 = vadd.f32 0.0, %v192
  %194 = vmatmul.bf16.gmra.mxu0 %v118
  %v195 = vpop.f32.mrf.mxu0
  %v196 = vadd.f32 0.0, %v195
  %v197 = vpop.f32.mrf.mxu0
  %v198 = vadd.f32 0.0, %v197
  %199 = vmatmul.bf16.gmra.mxu0 %v119
  %v200 = vpop.f32.mrf.mxu0
  %v201 = vadd.f32 0.0, %v200
  %v202 = vpop.f32.mrf.mxu0
  %v203 = vadd.f32 0.0, %v202
  %204 = vmatmul.bf16.gmra.mxu0 %v120
  %v205 = vpop.f32.mrf.mxu0
  %v206 = vadd.f32 0.0, %v205
  %v207 = vpop.f32.mrf.mxu0
  %v208 = vadd.f32 0.0, %v207
  %209 = vmatmul.bf16.gmra.mxu0 %v121
  %v210 = vpop.f32.mrf.mxu0
  %v211 = vadd.f32 0.0, %v210
  %v212 = vpop.f32.mrf.mxu0
  %v213 = vadd.f32 0.0, %v212
  %214 = vmatmul.bf16.gmra.mxu0 %v122
  %v215 = vpop.f32.mrf.mxu0
  %v216 = vadd.f32 0.0, %v215
  %v217 = vpop.f32.mrf.mxu0
  %v218 = vadd.f32 0.0, %v217
  %219 = vmatmul.bf16.gmra.mxu0 %v123
  %v220 = vpop.f32.mrf.mxu0
  %v221 = vadd.f32 0.0, %v220
  %v222 = vpop.f32.mrf.mxu0
  %v223 = vadd.f32 0.0, %v222
  %224 = vmatmul.bf16.gmra.mxu0 %v124
  %v225 = vpop.f32.mrf.mxu0
  %v226 = vadd.f32 0.0, %v225
  %v227 = vpop.f32.mrf.mxu0
  %v228 = vadd.f32 0.0, %v227
  %229 = vdwg.mxu0
  %v230 = vadd.f32 %v37, %v191
  %v231 = vadd.f32 %v38, %v193
  %v232 = vadd.f32 %v39, %v196
  %v233 = vadd.f32 %v40, %v198
  %v234 = vadd.f32 %v41, %v201
  %v235 = vadd.f32 %v42, %v203
  %v236 = vadd.f32 %v43, %v206
  %v237 = vadd.f32 %v44, %v208
  %v238 = vadd.f32 %v45, %v211
  %v239 = vadd.f32 %v46, %v213
  %v240 = vadd.f32 %v47, %v216
  %v241 = vadd.f32 %v48, %v218
  %v242 = vadd.f32 %v49, %v221
  %v243 = vadd.f32 %v50, %v223
  %v244 = vadd.f32 %v51, %v226
  %v245 = vadd.f32 %v52, %v228
  %246 = vst [vmem:[#allocation2] sm:$0xff] %v230
  %247 = vst [vmem:[#allocation2 + $0x8] sm:$0xff] %v231
  %248 = vst [vmem:[#allocation2 + $0x10] sm:$0xff] %v232
  %249 = vst [vmem:[#allocation2 + $0x18] sm:$0xff] %v233
  %250 = vst [vmem:[#allocation2 + $0x20] sm:$0xff] %v234
  %251 = vst [vmem:[#allocation2 + $0x28] sm:$0xff] %v235
  %252 = vst [vmem:[#allocation2 + $0x30] sm:$0xff] %v236
  %253 = vst [vmem:[#allocation2 + $0x38] sm:$0xff] %v237
  %254 = vst [vmem:[#allocation2 + $0x40] sm:$0xff] %v238
  %255 = vst [vmem:[#allocation2 + $0x48] sm:$0xff] %v239
  %256 = vst [vmem:[#allocation2 + $0x50] sm:$0xff] %v240
  %257 = vst [vmem:[#allocation2 + $0x58] sm:$0xff] %v241
  %258 = vst [vmem:[#allocation2 + $0x60] sm:$0xff] %v242
  %259 = vst [vmem:[#allocation2 + $0x68] sm:$0xff] %v243
  %260 = vst [vmem:[#allocation2 + $0x70] sm:$0xff] %v244
  %261 = vst [vmem:[#allocation2 + $0x78] sm:$0xff] %v245
  // Predicated region
  $region22: #{gcn_forward.3} parent=0 // pred_check
    %p262 = pneg %p17
  $region23: #{gcn_forward.3} parent=0 // pred_check_branch
    %264 = sbr.rel (%p262) target = $region25
  $region24: #{gcn_forward.3} parent=0 // pred_region
    %v265 = vld [vmem:[#allocation2] sm:$0xff]
    %v266 = vld [vmem:[#allocation2 + $0x8] sm:$0xff]
    %v267 = vld [vmem:[#allocation2 + $0x10] sm:$0xff]
    %v268 = vld [vmem:[#allocation2 + $0x18] sm:$0xff]
    %v269 = vld [vmem:[#allocation2 + $0x20] sm:$0xff]
    %v270 = vld [vmem:[#allocation2 + $0x28] sm:$0xff]
    %v271 = vld [vmem:[#allocation2 + $0x30] sm:$0xff]
    %v272 = vld [vmem:[#allocation2 + $0x38] sm:$0xff]
    %v273 = vld [vmem:[#allocation2 + $0x40] sm:$0xff]
    %v274 = vld [vmem:[#allocation2 + $0x48] sm:$0xff]
    %v275 = vld [vmem:[#allocation2 + $0x50] sm:$0xff]
    %v276 = vld [vmem:[#allocation2 + $0x58] sm:$0xff]
    %v277 = vld [vmem:[#allocation2 + $0x60] sm:$0xff]
    %v278 = vld [vmem:[#allocation2 + $0x68] sm:$0xff]
    %v279 = vld [vmem:[#allocation2 + $0x70] sm:$0xff]
    %v280 = vld [vmem:[#allocation2 + $0x78] sm:$0xff]
    %v281 = vpack.c.bf16 %v266, %v265
    %v282 = vpack.c.bf16 %v268, %v267
    %v283 = vpack.c.bf16 %v270, %v269
    %v284 = vpack.c.bf16 %v272, %v271
    %v285 = vpack.c.bf16 %v274, %v273
    %v286 = vpack.c.bf16 %v276, %v275
    %v287 = vpack.c.bf16 %v278, %v277
    %v288 = vpack.c.bf16 %v280, %v279
    %v289 = vld [vmem:[%s2] sm:$0xf]
    %v290 = vld [vmem:[%s2 + $0x4] sm:$0xf]
    %v291 = vld [vmem:[%s2 + $0x8] sm:$0xf]
    %v292 = vld [vmem:[%s2 + $0xc] sm:$0xf]
    %v293 = vld [vmem:[%s2 + $0x10] sm:$0xf]
    %v294 = vld [vmem:[%s2 + $0x14] sm:$0xf]
    %v295 = vld [vmem:[%s2 + $0x18] sm:$0xf]
    %v296 = vld [vmem:[%s2 + $0x1c] sm:$0xf]
    %v297 = vld [vmem:[%s2 + $0x20] sm:$0xf]
    %v298 = vld [vmem:[%s2 + $0x24] sm:$0xf]
    %v299 = vld [vmem:[%s2 + $0x28] sm:$0xf]
    %v300 = vld [vmem:[%s2 + $0x2c] sm:$0xf]
    %v301 = vld [vmem:[%s2 + $0x30] sm:$0xf]
    %v302 = vld [vmem:[%s2 + $0x34] sm:$0xf]
    %v303 = vld [vmem:[%s2 + $0x38] sm:$0xf]
    %v304 = vld [vmem:[%s2 + $0x3c] sm:$0xf]
    %v305 = vld [vmem:[%s3] sm:$0x1]
    %v307 = vperm.slane %v305, 0
    %v325 = vunpack.c.l.b16 %v289
    %v326 = vunpack.c.l.b16 %v290
    %v327 = vunpack.c.l.b16 %v291
    %v328 = vunpack.c.l.b16 %v292
    %v329 = vunpack.c.l.b16 %v293
    %v330 = vunpack.c.l.b16 %v294
    %v331 = vunpack.c.l.b16 %v295
    %v332 = vunpack.c.l.b16 %v296
    %v333 = vunpack.c.l.b16 %v297
    %v334 = vunpack.c.l.b16 %v298
    %v335 = vunpack.c.l.b16 %v299
    %v336 = vunpack.c.l.b16 %v300
    %v337 = vunpack.c.l.b16 %v301
    %v338 = vunpack.c.l.b16 %v302
    %v339 = vunpack.c.l.b16 %v303
    %v340 = vunpack.c.l.b16 %v304
    %v341 = vpack.c.b16 %v326, %v325
    %v342 = vpack.c.b16 %v328, %v327
    %v343 = vpack.c.b16 %v330, %v329
    %v344 = vpack.c.b16 %v332, %v331
    %v345 = vpack.c.b16 %v334, %v333
    %v346 = vpack.c.b16 %v336, %v335
    %v347 = vpack.c.b16 %v338, %v337
    %v348 = vpack.c.b16 %v340, %v339
    %357 = vmatpush.bf16.msra.mxu0 %v348
    %358 = vmatpush.bf16.msra.mxu0 %v347
    %359 = vmatpush.bf16.msra.mxu0 %v346
    %360 = vmatpush.bf16.msra.mxu0 %v345
    %361 = vmatpush.bf16.msra.mxu0 %v344
    %362 = vmatpush.bf16.msra.mxu0 %v343
    %363 = vmatpush.bf16.msra.mxu0 %v342
    %364 = vmatpush.bf16.msra.mxu0 %v341
    %365 = vmatmul.bf16.gmra.mxu0 %v281
    %v366 = vpop.f32.mrf.mxu0
    %v367 = vadd.f32 %v307, %v366
    %v368 = vpop.f32.mrf.mxu0
    %v369 = vadd.f32 %v307, %v368
    %370 = vmatmul.bf16.gmra.mxu0 %v282
    %v371 = vpop.f32.mrf.mxu0
    %v372 = vadd.f32 %v307, %v371
    %v373 = vpop.f32.mrf.mxu0
    %v374 = vadd.f32 %v307, %v373
    %375 = vmatmul.bf16.gmra.mxu0 %v283
    %v376 = vpop.f32.mrf.mxu0
    %v377 = vadd.f32 %v307, %v376
    %v378 = vpop.f32.mrf.mxu0
    %v379 = vadd.f32 %v307, %v378
    %380 = vmatmul.bf16.gmra.mxu0 %v284
    %v381 = vpop.f32.mrf.mxu0
    %v382 = vadd.f32 %v307, %v381
    %v383 = vpop.f32.mrf.mxu0
    %v384 = vadd.f32 %v307, %v383
    %385 = vmatmul.bf16.gmra.mxu0 %v285
    %v386 = vpop.f32.mrf.mxu0
    %v387 = vadd.f32 %v307, %v386
    %v388 = vpop.f32.mrf.mxu0
    %v389 = vadd.f32 %v307, %v388
    %390 = vmatmul.bf16.gmra.mxu0 %v286
    %v391 = vpop.f32.mrf.mxu0
    %v392 = vadd.f32 %v307, %v391
    %v393 = vpop.f32.mrf.mxu0
    %v394 = vadd.f32 %v307, %v393
    %395 = vmatmul.bf16.gmra.mxu0 %v287
    %v396 = vpop.f32.mrf.mxu0
    %v397 = vadd.f32 %v307, %v396
    %v398 = vpop.f32.mrf.mxu0
    %v399 = vadd.f32 %v307, %v398
    %400 = vmatmul.bf16.gmra.mxu0 %v288
    %v401 = vpop.f32.mrf.mxu0
    %v402 = vadd.f32 %v307, %v401
    %v403 = vpop.f32.mrf.mxu0
    %v404 = vadd.f32 %v307, %v403
    %405 = vdwg.mxu0
    %406 = vst [vmem:[%s4] sm:$0xff] %v367
    %407 = vst [vmem:[%s4 + $0x8] sm:$0xff] %v369
    %408 = vst [vmem:[%s4 + $0x10] sm:$0xff] %v372
    %409 = vst [vmem:[%s4 + $0x18] sm:$0xff] %v374
    %410 = vst [vmem:[%s4 + $0x20] sm:$0xff] %v377
    %411 = vst [vmem:[%s4 + $0x28] sm:$0xff] %v379
    %412 = vst [vmem:[%s4 + $0x30] sm:$0xff] %v382
    %413 = vst [vmem:[%s4 + $0x38] sm:$0xff] %v384
    %414 = vst [vmem:[%s4 + $0x40] sm:$0xff] %v387
    %415 = vst [vmem:[%s4 + $0x48] sm:$0xff] %v389
    %416 = vst [vmem:[%s4 + $0x50] sm:$0xff] %v392
    %417 = vst [vmem:[%s4 + $0x58] sm:$0xff] %v394
    %418 = vst [vmem:[%s4 + $0x60] sm:$0xff] %v397
    %419 = vst [vmem:[%s4 + $0x68] sm:$0xff] %v399
    %420 = vst [vmem:[%s4 + $0x70] sm:$0xff] %v402
    %421 = vst [vmem:[%s4 + $0x78] sm:$0xff] %v404
  $region25: #{gcn_forward.3} parent=0 // pred_fallthru
    _
  // Predicated region
  $region26: #{gcn_forward.3} parent=0 // pred_check
    _
  $region27: #{gcn_forward.3} parent=0 // pred_check_branch
    %423 = sbr.rel (0) target = $region29
  $region28: #{gcn_forward.3} parent=0 // pred_region
    _
  $region29: #{gcn_forward.3} parent=0 // pred_fallthru
    _
  // Predicated region
  $region30: #{gcn_forward.3} parent=0 // pred_check
    _
  $region31: #{gcn_forward.3} parent=0 // pred_check_branch
    %425 = sbr.rel (0) target = $region33
  $region32: #{gcn_forward.3} parent=0 // pred_region
    _
  $region33: #{gcn_forward.3} parent=0 // pred_fallthru
    _

// kernel: gcn_forward.2
$region0: #{gcn_forward.2}
  #allocation0 [shape = 'u32[]', space=smem, size = 0x4, offset = 0x4, fixed_abs, tag = 'smem constant byte address 0x4 - core index']
  #allocation1 [shape = 'u32[72,128]{1,0:T(1,128)}', space=vmem, size = 0x9000, scoped, tag = 'internal scratch']
  #allocation2 [shape = 'f32[128,128]{1,0:T(8,128)}', space=vmem, size = 0x10000, scoped, tag = 'scratch operand']
  %s0 = inlined_call_operand.vmem [shape: bf16[128,128], index: 0, kind: input, shape index: {}]
  %s1 = inlined_call_operand.vmem [shape: bf16[128,128], index: 1, kind: input, shape index: {}]
  %s2 = inlined_call_operand.vmem [shape: bf16[128,128], index: 2, kind: input, shape index: {}]
  %s3 = inlined_call_operand.vmem [shape: f32[1,128], index: 3, kind: input, shape index: {}]
  %s4 = inlined_call_operand.vmem [shape: bf16[128,128], index: 4, kind: output, shape index: {}]
  %s5 = sld [smem:[#allocation0]]
  $region34: #{gcn_forward.2} parent=0
    _
  %s7 = ssub.s32 1, %s5
  %s8 = scalar_select 0, %s7, %s5
  // Predicated region
  $region2: #{gcn_forward.2} parent=0 // pred_check
    _
  $region3: #{gcn_forward.2} parent=0 // pred_check_branch
    %10 = sbr.rel (0) target = $region5
  $region4: #{gcn_forward.2} parent=0 // pred_region
    _
  $region5: #{gcn_forward.2} parent=0 // pred_fallthru
    _
  // Predicated region
  $region6: #{gcn_forward.2} parent=0 // pred_check
    _
  $region7: #{gcn_forward.2} parent=0 // pred_check_branch
    %12 = sbr.rel (0) target = $region9
  $region8: #{gcn_forward.2} parent=0 // pred_region
    _
  $region9: #{gcn_forward.2} parent=0 // pred_fallthru
    _
  // Predicated region
  $region10: #{gcn_forward.2} parent=0 // pred_check
    _
  $region11: #{gcn_forward.2} parent=0 // pred_check_branch
    %14 = sbr.rel (0) target = $region13
  $region12: #{gcn_forward.2} parent=0 // pred_region
    _
  $region13: #{gcn_forward.2} parent=0 // pred_fallthru
    _
  // Predicated region
  $region14: #{gcn_forward.2} parent=0 // pred_check
    _
  $region15: #{gcn_forward.2} parent=0 // pred_check_branch
    %16 = sbr.rel (0) target = $region17
  $region16: #{gcn_forward.2} parent=0 // pred_region
    _
  $region17: #{gcn_forward.2} parent=0 // pred_fallthru
    _
  %p17 = scmp.eq.s32.totalorder 0, 0
  // Predicated region
  $region18: #{gcn_forward.2} parent=0 // pred_check
    %p18 = pneg %p17
  $region19: #{gcn_forward.2} parent=0 // pred_check_branch
    %20 = sbr.rel (%p18) target = $region21
  $region20: #{gcn_forward.2} parent=0 // pred_region
    %21 = vst [vmem:[#allocation2] sm:$0xff] 0.0
    %22 = vst [vmem:[#allocation2 + $0x8] sm:$0xff] 0.0
    %23 = vst [vmem:[#allocation2 + $0x10] sm:$0xff] 0.0
    %24 = vst [vmem:[#allocation2 + $0x18] sm:$0xff] 0.0
    %25 = vst [vmem:[#allocation2 + $0x20] sm:$0xff] 0.0
    %26 = vst [vmem:[#allocation2 + $0x28] sm:$0xff] 0.0
    %27 = vst [vmem:[#allocation2 + $0x30] sm:$0xff] 0.0
    %28 = vst [vmem:[#allocation2 + $0x38] sm:$0xff] 0.0
    %29 = vst [vmem:[#allocation2 + $0x40] sm:$0xff] 0.0
    %30 = vst [vmem:[#allocation2 + $0x48] sm:$0xff] 0.0
    %31 = vst [vmem:[#allocation2 + $0x50] sm:$0xff] 0.0
    %32 = vst [vmem:[#allocation2 + $0x58] sm:$0xff] 0.0
    %33 = vst [vmem:[#allocation2 + $0x60] sm:$0xff] 0.0
    %34 = vst [vmem:[#allocation2 + $0x68] sm:$0xff] 0.0
    %35 = vst [vmem:[#allocation2 + $0x70] sm:$0xff] 0.0
    %36 = vst [vmem:[#allocation2 + $0x78] sm:$0xff] 0.0
  $region21: #{gcn_forward.2} parent=0 // pred_fallthru
    _
  %v37 = vld [vmem:[#allocation2] sm:$0xff]
  %v38 = vld [vmem:[#allocation2 + $0x8] sm:$0xff]
  %v39 = vld [vmem:[#allocation2 + $0x10] sm:$0xff]
  %v40 = vld [vmem:[#allocation2 + $0x18] sm:$0xff]
  %v41 = vld [vmem:[#allocation2 + $0x20] sm:$0xff]
  %v42 = vld [vmem:[#allocation2 + $0x28] sm:$0xff]
  %v43 = vld [vmem:[#allocation2 + $0x30] sm:$0xff]
  %v44 = vld [vmem:[#allocation2 + $0x38] sm:$0xff]
  %v45 = vld [vmem:[#allocation2 + $0x40] sm:$0xff]
  %v46 = vld [vmem:[#allocation2 + $0x48] sm:$0xff]
  %v47 = vld [vmem:[#allocation2 + $0x50] sm:$0xff]
  %v48 = vld [vmem:[#allocation2 + $0x58] sm:$0xff]
  %v49 = vld [vmem:[#allocation2 + $0x60] sm:$0xff]
  %v50 = vld [vmem:[#allocation2 + $0x68] sm:$0xff]
  %v51 = vld [vmem:[#allocation2 + $0x70] sm:$0xff]
  %v52 = vld [vmem:[#allocation2 + $0x78] sm:$0xff]
  %v53 = vld [vmem:[%s0] sm:$0xf]
  %v54 = vld [vmem:[%s0 + $0x4] sm:$0xf]
  %v55 = vld [vmem:[%s0 + $0x8] sm:$0xf]
  %v56 = vld [vmem:[%s0 + $0xc] sm:$0xf]
  %v57 = vld [vmem:[%s0 + $0x10] sm:$0xf]
  %v58 = vld [vmem:[%s0 + $0x14] sm:$0xf]
  %v59 = vld [vmem:[%s0 + $0x18] sm:$0xf]
  %v60 = vld [vmem:[%s0 + $0x1c] sm:$0xf]
  %v61 = vld [vmem:[%s0 + $0x20] sm:$0xf]
  %v62 = vld [vmem:[%s0 + $0x24] sm:$0xf]
  %v63 = vld [vmem:[%s0 + $0x28] sm:$0xf]
  %v64 = vld [vmem:[%s0 + $0x2c] sm:$0xf]
  %v65 = vld [vmem:[%s0 + $0x30] sm:$0xf]
  %v66 = vld [vmem:[%s0 + $0x34] sm:$0xf]
  %v67 = vld [vmem:[%s0 + $0x38] sm:$0xf]
  %v68 = vld [vmem:[%s0 + $0x3c] sm:$0xf]
  %v69 = vld [vmem:[%s1] sm:$0xf]
  %v70 = vld [vmem:[%s1 + $0x4] sm:$0xf]
  %v71 = vld [vmem:[%s1 + $0x8] sm:$0xf]
  %v72 = vld [vmem:[%s1 + $0xc] sm:$0xf]
  %v73 = vld [vmem:[%s1 + $0x10] sm:$0xf]
  %v74 = vld [vmem:[%s1 + $0x14] sm:$0xf]
  %v75 = vld [vmem:[%s1 + $0x18] sm:$0xf]
  %v76 = vld [vmem:[%s1 + $0x1c] sm:$0xf]
  %v77 = vld [vmem:[%s1 + $0x20] sm:$0xf]
  %v78 = vld [vmem:[%s1 + $0x24] sm:$0xf]
  %v79 = vld [vmem:[%s1 + $0x28] sm:$0xf]
  %v80 = vld [vmem:[%s1 + $0x2c] sm:$0xf]
  %v81 = vld [vmem:[%s1 + $0x30] sm:$0xf]
  %v82 = vld [vmem:[%s1 + $0x34] sm:$0xf]
  %v83 = vld [vmem:[%s1 + $0x38] sm:$0xf]
  %v84 = vld [vmem:[%s1 + $0x3c] sm:$0xf]
  %v101 = vunpack.c.l.b16 %v53
  %v102 = vunpack.c.l.b16 %v54
  %v103 = vunpack.c.l.b16 %v55
  %v104 = vunpack.c.l.b16 %v56
  %v105 = vunpack.c.l.b16 %v57
  %v106 = vunpack.c.l.b16 %v58
  %v107 = vunpack.c.l.b16 %v59
  %v108 = vunpack.c.l.b16 %v60
  %v109 = vunpack.c.l.b16 %v61
  %v110 = vunpack.c.l.b16 %v62
  %v111 = vunpack.c.l.b16 %v63
  %v112 = vunpack.c.l.b16 %v64
  %v113 = vunpack.c.l.b16 %v65
  %v114 = vunpack.c.l.b16 %v66
  %v115 = vunpack.c.l.b16 %v67
  %v116 = vunpack.c.l.b16 %v68
  %v117 = vpack.c.b16 %v102, %v101
  %v118 = vpack.c.b16 %v104, %v103
  %v119 = vpack.c.b16 %v106, %v105
  %v120 = vpack.c.b16 %v108, %v107
  %v121 = vpack.c.b16 %v110, %v109
  %v122 = vpack.c.b16 %v112, %v111
  %v123 = vpack.c.b16 %v114, %v113
  %v124 = vpack.c.b16 %v116, %v115
  %v149 = vunpack.c.l.b16 %v69
  %v150 = vunpack.c.l.b16 %v70
  %v151 = vunpack.c.l.b16 %v71
  %v152 = vunpack.c.l.b16 %v72
  %v153 = vunpack.c.l.b16 %v73
  %v154 = vunpack.c.l.b16 %v74
  %v155 = vunpack.c.l.b16 %v75
  %v156 = vunpack.c.l.b16 %v76
  %v157 = vunpack.c.l.b16 %v77
  %v158 = vunpack.c.l.b16 %v78
  %v159 = vunpack.c.l.b16 %v79
  %v160 = vunpack.c.l.b16 %v80
  %v161 = vunpack.c.l.b16 %v81
  %v162 = vunpack.c.l.b16 %v82
  %v163 = vunpack.c.l.b16 %v83
  %v164 = vunpack.c.l.b16 %v84
  %v165 = vpack.c.b16 %v150, %v149
  %v166 = vpack.c.b16 %v152, %v151
  %v167 = vpack.c.b16 %v154, %v153
  %v168 = vpack.c.b16 %v156, %v155
  %v169 = vpack.c.b16 %v158, %v157
  %v170 = vpack.c.b16 %v160, %v159
  %v171 = vpack.c.b16 %v162, %v161
  %v172 = vpack.c.b16 %v164, %v163
  %181 = vmatpush.bf16.msra.mxu0 %v172
  %182 = vmatpush.bf16.msra.mxu0 %v171
  %183 = vmatpush.bf16.msra.mxu0 %v170
  %184 = vmatpush.bf16.msra.mxu0 %v169
  %185 = vmatpush.bf16.msra.mxu0 %v168
  %186 = vmatpush.bf16.msra.mxu0 %v167
  %187 = vmatpush.bf16.msra.mxu0 %v166
  %188 = vmatpush.bf16.msra.mxu0 %v165
  %189 = vmatmul.bf16.gmra.mxu0 %v117
  %v190 = vpop.f32.mrf.mxu0
  %v191 = vadd.f32 0.0, %v190
  %v192 = vpop.f32.mrf.mxu0
  %v193 = vadd.f32 0.0, %v192
  %194 = vmatmul.bf16.gmra.mxu0 %v118
  %v195 = vpop.f32.mrf.mxu0
  %v196 = vadd.f32 0.0, %v195
  %v197 = vpop.f32.mrf.mxu0
  %v198 = vadd.f32 0.0, %v197
  %199 = vmatmul.bf16.gmra.mxu0 %v119
  %v200 = vpop.f32.mrf.mxu0
  %v201 = vadd.f32 0.0, %v200
  %v202 = vpop.f32.mrf.mxu0
  %v203 = vadd.f32 0.0, %v202
  %204 = vmatmul.bf16.gmra.mxu0 %v120
  %v205 = vpop.f32.mrf.mxu0
  %v206 = vadd.f32 0.0, %v205
  %v207 = vpop.f32.mrf.mxu0
  %v208 = vadd.f32 0.0, %v207
  %209 = vmatmul.bf16.gmra.mxu0 %v121
  %v210 = vpop.f32.mrf.mxu0
  %v211 = vadd.f32 0.0, %v210
  %v212 = vpop.f32.mrf.mxu0
  %v213 = vadd.f32 0.0, %v212
  %214 = vmatmul.bf16.gmra.mxu0 %v122
  %v215 = vpop.f32.mrf.mxu0
  %v216 = vadd.f32 0.0, %v215
  %v217 = vpop.f32.mrf.mxu0
  %v218 = vadd.f32 0.0, %v217
  %219 = vmatmul.bf16.gmra.mxu0 %v123
  %v220 = vpop.f32.mrf.mxu0
  %v221 = vadd.f32 0.0, %v220
  %v222 = vpop.f32.mrf.mxu0
  %v223 = vadd.f32 0.0, %v222
  %224 = vmatmul.bf16.gmra.mxu0 %v124
  %v225 = vpop.f32.mrf.mxu0
  %v226 = vadd.f32 0.0, %v225
  %v227 = vpop.f32.mrf.mxu0
  %v228 = vadd.f32 0.0, %v227
  %229 = vdwg.mxu0
  %v230 = vadd.f32 %v37, %v191
  %v231 = vadd.f32 %v38, %v193
  %v232 = vadd.f32 %v39, %v196
  %v233 = vadd.f32 %v40, %v198
  %v234 = vadd.f32 %v41, %v201
  %v235 = vadd.f32 %v42, %v203
  %v236 = vadd.f32 %v43, %v206
  %v237 = vadd.f32 %v44, %v208
  %v238 = vadd.f32 %v45, %v211
  %v239 = vadd.f32 %v46, %v213
  %v240 = vadd.f32 %v47, %v216
  %v241 = vadd.f32 %v48, %v218
  %v242 = vadd.f32 %v49, %v221
  %v243 = vadd.f32 %v50, %v223
  %v244 = vadd.f32 %v51, %v226
  %v245 = vadd.f32 %v52, %v228
  %246 = vst [vmem:[#allocation2] sm:$0xff] %v230
  %247 = vst [vmem:[#allocation2 + $0x8] sm:$0xff] %v231
  %248 = vst [vmem:[#allocation2 + $0x10] sm:$0xff] %v232
  %249 = vst [vmem:[#allocation2 + $0x18] sm:$0xff] %v233
  %250 = vst [vmem:[#allocation2 + $0x20] sm:$0xff] %v234
  %251 = vst [vmem:[#allocation2 + $0x28] sm:$0xff] %v235
  %252 = vst [vmem:[#allocation2 + $0x30] sm:$0xff] %v236
  %253 = vst [vmem:[#allocation2 + $0x38] sm:$0xff] %v237
  %254 = vst [vmem:[#allocation2 + $0x40] sm:$0xff] %v238
  %255 = vst [vmem:[#allocation2 + $0x48] sm:$0xff] %v239
  %256 = vst [vmem:[#allocation2 + $0x50] sm:$0xff] %v240
  %257 = vst [vmem:[#allocation2 + $0x58] sm:$0xff] %v241
  %258 = vst [vmem:[#allocation2 + $0x60] sm:$0xff] %v242
  %259 = vst [vmem:[#allocation2 + $0x68] sm:$0xff] %v243
  %260 = vst [vmem:[#allocation2 + $0x70] sm:$0xff] %v244
  %261 = vst [vmem:[#allocation2 + $0x78] sm:$0xff] %v245
  // Predicated region
  $region22: #{gcn_forward.2} parent=0 // pred_check
    %p262 = pneg %p17
  $region23: #{gcn_forward.2} parent=0 // pred_check_branch
    %264 = sbr.rel (%p262) target = $region25
  $region24: #{gcn_forward.2} parent=0 // pred_region
    %v265 = vld [vmem:[#allocation2] sm:$0xff]
    %v266 = vld [vmem:[#allocation2 + $0x8] sm:$0xff]
    %v267 = vld [vmem:[#allocation2 + $0x10] sm:$0xff]
    %v268 = vld [vmem:[#allocation2 + $0x18] sm:$0xff]
    %v269 = vld [vmem:[#allocation2 + $0x20] sm:$0xff]
    %v270 = vld [vmem:[#allocation2 + $0x28] sm:$0xff]
    %v271 = vld [vmem:[#allocation2 + $0x30] sm:$0xff]
    %v272 = vld [vmem:[#allocation2 + $0x38] sm:$0xff]
    %v273 = vld [vmem:[#allocation2 + $0x40] sm:$0xff]
    %v274 = vld [vmem:[#allocation2 + $0x48] sm:$0xff]
    %v275 = vld [vmem:[#allocation2 + $0x50] sm:$0xff]
    %v276 = vld [vmem:[#allocation2 + $0x58] sm:$0xff]
    %v277 = vld [vmem:[#allocation2 + $0x60] sm:$0xff]
    %v278 = vld [vmem:[#allocation2 + $0x68] sm:$0xff]
    %v279 = vld [vmem:[#allocation2 + $0x70] sm:$0xff]
    %v280 = vld [vmem:[#allocation2 + $0x78] sm:$0xff]
    %v281 = vpack.c.bf16 %v266, %v265
    %v282 = vpack.c.bf16 %v268, %v267
    %v283 = vpack.c.bf16 %v270, %v269
    %v284 = vpack.c.bf16 %v272, %v271
    %v285 = vpack.c.bf16 %v274, %v273
    %v286 = vpack.c.bf16 %v276, %v275
    %v287 = vpack.c.bf16 %v278, %v277
    %v288 = vpack.c.bf16 %v280, %v279
    %v289 = vld [vmem:[%s2] sm:$0xf]
    %v290 = vld [vmem:[%s2 + $0x4] sm:$0xf]
    %v291 = vld [vmem:[%s2 + $0x8] sm:$0xf]
    %v292 = vld [vmem:[%s2 + $0xc] sm:$0xf]
    %v293 = vld [vmem:[%s2 + $0x10] sm:$0xf]
    %v294 = vld [vmem:[%s2 + $0x14] sm:$0xf]
    %v295 = vld [vmem:[%s2 + $0x18] sm:$0xf]
    %v296 = vld [vmem:[%s2 + $0x1c] sm:$0xf]
    %v297 = vld [vmem:[%s2 + $0x20] sm:$0xf]
    %v298 = vld [vmem:[%s2 + $0x24] sm:$0xf]
    %v299 = vld [vmem:[%s2 + $0x28] sm:$0xf]
    %v300 = vld [vmem:[%s2 + $0x2c] sm:$0xf]
    %v301 = vld [vmem:[%s2 + $0x30] sm:$0xf]
    %v302 = vld [vmem:[%s2 + $0x34] sm:$0xf]
    %v303 = vld [vmem:[%s2 + $0x38] sm:$0xf]
    %v304 = vld [vmem:[%s2 + $0x3c] sm:$0xf]
    %v305 = vld [vmem:[%s3] sm:$0x1]
    %v307 = vperm.slane %v305, 0
    %v325 = vunpack.c.l.b16 %v289
    %v326 = vunpack.c.l.b16 %v290
    %v327 = vunpack.c.l.b16 %v291
    %v328 = vunpack.c.l.b16 %v292
    %v329 = vunpack.c.l.b16 %v293
    %v330 = vunpack.c.l.b16 %v294
    %v331 = vunpack.c.l.b16 %v295
    %v332 = vunpack.c.l.b16 %v296
    %v333 = vunpack.c.l.b16 %v297
    %v334 = vunpack.c.l.b16 %v298
    %v335 = vunpack.c.l.b16 %v299
    %v336 = vunpack.c.l.b16 %v300
    %v337 = vunpack.c.l.b16 %v301
    %v338 = vunpack.c.l.b16 %v302
    %v339 = vunpack.c.l.b16 %v303
    %v340 = vunpack.c.l.b16 %v304
    %v341 = vpack.c.b16 %v326, %v325
    %v342 = vpack.c.b16 %v328, %v327
    %v343 = vpack.c.b16 %v330, %v329
    %v344 = vpack.c.b16 %v332, %v331
    %v345 = vpack.c.b16 %v334, %v333
    %v346 = vpack.c.b16 %v336, %v335
    %v347 = vpack.c.b16 %v338, %v337
    %v348 = vpack.c.b16 %v340, %v339
    %357 = vmatpush.bf16.msra.mxu0 %v348
    %358 = vmatpush.bf16.msra.mxu0 %v347
    %359 = vmatpush.bf16.msra.mxu0 %v346
    %360 = vmatpush.bf16.msra.mxu0 %v345
    %361 = vmatpush.bf16.msra.mxu0 %v344
    %362 = vmatpush.bf16.msra.mxu0 %v343
    %363 = vmatpush.bf16.msra.mxu0 %v342
    %364 = vmatpush.bf16.msra.mxu0 %v341
    %365 = vmatmul.bf16.gmra.mxu0 %v281
    %v366 = vpop.f32.mrf.mxu0
    %v367 = vadd.f32 %v307, %v366
    %v368 = vpop.f32.mrf.mxu0
    %v369 = vadd.f32 %v307, %v368
    %370 = vmatmul.bf16.gmra.mxu0 %v282
    %v371 = vpop.f32.mrf.mxu0
    %v372 = vadd.f32 %v307, %v371
    %v373 = vpop.f32.mrf.mxu0
    %v374 = vadd.f32 %v307, %v373
    %375 = vmatmul.bf16.gmra.mxu0 %v283
    %v376 = vpop.f32.mrf.mxu0
    %v377 = vadd.f32 %v307, %v376
    %v378 = vpop.f32.mrf.mxu0
    %v379 = vadd.f32 %v307, %v378
    %380 = vmatmul.bf16.gmra.mxu0 %v284
    %v381 = vpop.f32.mrf.mxu0
    %v382 = vadd.f32 %v307, %v381
    %v383 = vpop.f32.mrf.mxu0
    %v384 = vadd.f32 %v307, %v383
    %385 = vmatmul.bf16.gmra.mxu0 %v285
    %v386 = vpop.f32.mrf.mxu0
    %v387 = vadd.f32 %v307, %v386
    %v388 = vpop.f32.mrf.mxu0
    %v389 = vadd.f32 %v307, %v388
    %390 = vmatmul.bf16.gmra.mxu0 %v286
    %v391 = vpop.f32.mrf.mxu0
    %v392 = vadd.f32 %v307, %v391
    %v393 = vpop.f32.mrf.mxu0
    %v394 = vadd.f32 %v307, %v393
    %395 = vmatmul.bf16.gmra.mxu0 %v287
    %v396 = vpop.f32.mrf.mxu0
    %v397 = vadd.f32 %v307, %v396
    %v398 = vpop.f32.mrf.mxu0
    %v399 = vadd.f32 %v307, %v398
    %400 = vmatmul.bf16.gmra.mxu0 %v288
    %v401 = vpop.f32.mrf.mxu0
    %v402 = vadd.f32 %v307, %v401
    %v403 = vpop.f32.mrf.mxu0
    %v404 = vadd.f32 %v307, %v403
    %405 = vdwg.mxu0
    %v406 = vmax.f32 %v367, 0.0
    %v407 = vmax.f32 %v369, 0.0
    %v408 = vmax.f32 %v372, 0.0
    %v409 = vmax.f32 %v374, 0.0
    %v410 = vmax.f32 %v377, 0.0
    %v411 = vmax.f32 %v379, 0.0
    %v412 = vmax.f32 %v382, 0.0
    %v413 = vmax.f32 %v384, 0.0
    %v414 = vmax.f32 %v387, 0.0
    %v415 = vmax.f32 %v389, 0.0
    %v416 = vmax.f32 %v392, 0.0
    %v417 = vmax.f32 %v394, 0.0
    %v418 = vmax.f32 %v397, 0.0
    %v419 = vmax.f32 %v399, 0.0
    %v420 = vmax.f32 %v402, 0.0
    %v421 = vmax.f32 %v404, 0.0
    %v422 = vpack.c.bf16 %v406, %v406
    %v423 = vpack.c.bf16 %v407, %v407
    %v424 = vpack.c.bf16 %v408, %v408
    %v425 = vpack.c.bf16 %v409, %v409
    %v426 = vpack.c.bf16 %v410, %v410
    %v427 = vpack.c.bf16 %v411, %v411
    %v428 = vpack.c.bf16 %v412, %v412
    %v429 = vpack.c.bf16 %v413, %v413
    %v430 = vpack.c.bf16 %v414, %v414
    %v431 = vpack.c.bf16 %v415, %v415
    %v432 = vpack.c.bf16 %v416, %v416
    %v433 = vpack.c.bf16 %v417, %v417
    %v434 = vpack.c.bf16 %v418, %v418
    %v435 = vpack.c.bf16 %v419, %v419
    %v436 = vpack.c.bf16 %v420, %v420
    %v437 = vpack.c.bf16 %v421, %v421
    %438 = vst [vmem:[%s4] sm:$0xf] %v422
    %439 = vst [vmem:[%s4 + $0x4] sm:$0xf] %v423
    %440 = vst [vmem:[%s4 + $0x8] sm:$0xf] %v424
    %441 = vst [vmem:[%s4 + $0xc] sm:$0xf] %v425
    %442 = vst [vmem:[%s4 + $0x10] sm:$0xf] %v426
    %443 = vst [vmem:[%s4 + $0x14] sm:$0xf] %v427
    %444 = vst [vmem:[%s4 + $0x18] sm:$0xf] %v428
    %445 = vst [vmem:[%s4 + $0x1c] sm:$0xf] %v429
    %446 = vst [vmem:[%s4 + $0x20] sm:$0xf] %v430
    %447 = vst [vmem:[%s4 + $0x24] sm:$0xf] %v431
    %448 = vst [vmem:[%s4 + $0x28] sm:$0xf] %v432
    %449 = vst [vmem:[%s4 + $0x2c] sm:$0xf] %v433
    %450 = vst [vmem:[%s4 + $0x30] sm:$0xf] %v434
    %451 = vst [vmem:[%s4 + $0x34] sm:$0xf] %v435
    %452 = vst [vmem:[%s4 + $0x38] sm:$0xf] %v436
    %453 = vst [vmem:[%s4 + $0x3c] sm:$0xf] %v437
  $region25: #{gcn_forward.2} parent=0 // pred_fallthru
    _
  // Predicated region
  $region26: #{gcn_forward.2} parent=0 // pred_check
    _
  $region27: #{gcn_forward.2} parent=0 // pred_check_branch
    %455 = sbr.rel (0) target = $region29
  $region28: #{gcn_forward.2} parent=0 // pred_region
    _
  $region29: #{gcn_forward.2} parent=0 // pred_fallthru
    _
  // Predicated region
  $region30: #{gcn_forward.2} parent=0 // pred_check
    _
  $region31: #{gcn_forward.2} parent=0 // pred_check_branch
    %457 = sbr.rel (0) target = $region33
  $region32: #{gcn_forward.2} parent=0 // pred_region
    _
  $region33: #{gcn_forward.2} parent=0 // pred_fallthru
    _

</llo_original>
